<compile_context>
chip_gen: v7x
topology: tpu7x:2x2x1
jax: 0.10.0
libtpu: 0.0.40
codegen_flags: <defaults>
</compile_context>

<pallas_src>
import functools

import jax
import jax.numpy as jnp
from jax.experimental import pallas as pl
from jax.experimental.pallas import tpu as pltpu


def _addstcn_kernel(x_ref, packed_ref, sel_ref, out_ref, *,
                    num_levels, kernel_size, dilation_c, valid_len, chunk_b):
    K = kernel_size
    h = x_ref[0]                                   # (BC, Lp), compute dtype
    BC, Lp = h.shape
    B_blk = out_ref.shape[1]
    C = BC // B_blk
    params = packed_ref[...]                       # (BC, P) — one small tile

    # column layout of `params` (built in the wrapper):
    #   [0 .. nl*K-1]            depthwise conv taps, level-major / tap-minor
    #                            (level-0 taps already scaled by softmax(att))
    #   [nl*K .. +nl-1]          conv biases
    #   [nl*K+nl .. +nl-2]       PReLU alphas (levels 0 .. nl-2)
    #   [last]                   fused (linear o pointwise) bias (broadcast)
    wcol0 = 0
    bcol0 = num_levels * K
    acol0 = bcol0 + num_levels
    cbcol = acol0 + (num_levels - 1)

    # (1, Lp) lane iota hoisted once; one f32/bf16 mask per unique static shift
    lane = jax.lax.broadcasted_iota(jnp.int32, (1, Lp), 1)
    mask_cache = {}

    def causal_shift(v, s):
        # out[:, t] = v[:, t - s], zeros for t < s  (mask-mul, XLU roll)
        if s not in mask_cache:
            mask_cache[s] = (lane >= s).astype(v.dtype)
        return pltpu.roll(v, shift=s, axis=1) * mask_cache[s]

    for l in range(num_levels):
        d = dilation_c ** l
        w0 = wcol0 + l * K
        # causal dilated depthwise conv (Conv1d groups=C + Chomp1d):
        # init the accumulator with the un-shifted tap (k = K-1) plus the bias.
        out = params[:, w0 + K - 1:w0 + K] * h + params[:, bcol0 + l:bcol0 + l + 1]
        for k in range(K - 1):
            s = (K - 1 - k) * d
            if s >= valid_len:
                # shifted tap only touches t >= valid_len (sliced off later) and
                # can never flow back to t < valid_len through causal shifts.
                continue
            out = out + params[:, w0 + k:w0 + k + 1] * causal_shift(h, s)

        if l == 0:
            # FirstBlock: PReLU(conv(att*x)), no residual
            alpha = params[:, acol0:acol0 + 1]
            h = jnp.where(out > 0, out, alpha * out)
        elif l < num_levels - 1:
            # TemporalBlock: PReLU(conv(x) + x)
            alpha = params[:, acol0 + l:acol0 + l + 1]
            z = out + h
            h = jnp.where(z > 0, z, alpha * z)
        else:
            # LastBlock Linear + pointwise Conv1d, fused into one contraction:
            #   y[b, :] = sum_c combined_w[c] * z[b*C + c, :] + combined_b
            # realised as chunked MXU matmuls with a small block-diagonal
            # selection matrix sel (chunk_b, chunk_b*C) built in the wrapper.
            z = out + h
            cbv = params[0:1, cbcol:cbcol + 1]      # (1, 1) fused bias
            sel = sel_ref[...]                      # (chunk_b, chunk_b*C)
            n_chunks = B_blk // chunk_b
            for ci in range(n_chunks):
                zc = z[ci * chunk_b * C:(ci + 1) * chunk_b * C, :]
                yc = jnp.dot(sel, zc, preferred_element_type=jnp.float32)
                out_ref[0, ci * chunk_b:(ci + 1) * chunk_b, :] = (
                    yc + cbv).astype(out_ref.dtype)


def _pick_block_b(n, c, l_pad, elem_bytes, target_tile_bytes=1 << 20):
    """Batch block size: smallest power-of-two base so B_blk*C fills the
    8-sublane axis, then grow (powers of 2) while the activation tile stays
    under ~1 MiB and at least 2 grid blocks remain (megacore / 2 TCs)."""
    b = 1
    while (b * c) % 8 != 0:
        b *= 2
    while True:
        nb = b * 2
        if nb * c * l_pad * elem_bytes > target_tile_bytes:
            break
        if n <= nb:                    # would collapse to a single grid block
            break
        b = nb
    return b


def addstcn_forward(x, params, *, num_levels, kernel_size, dilation_c,
                    compute_dtype=jnp.float32):
    assert num_levels >= 2, "kernel fuses the LastBlock; needs num_levels >= 2"
    N, C, L = x.shape
    K = kernel_size
    L_pad = ((L + 127) // 128) * 128            # lane-dense time axis
    elem_bytes = jnp.dtype(compute_dtype).itemsize
    B_blk = _pick_block_b(N, C, L_pad, elem_bytes)
    BC = B_blk * C
    chunk_b = min(128, B_blk)                   # B_blk is a power of two -> divides
    num_blocks = -(-N // B_blk)                 # cdiv
    N_pad = num_blocks * B_blk

    # ---- parameter preprocessing (tiny, one-off XLA ops) --------------------
    att = jax.nn.softmax(params["fs_attention"].astype(jnp.float32), axis=0)[:, 0]
    # fold pointwise Conv1d(C,1,1) into the LastBlock Linear(C,C)
    pw = params["pw_w"][:, 0].astype(jnp.float32)                       # (C,)
    combined_w = pw @ params["lin_w"].astype(jnp.float32)               # (C,)
    combined_b = pw @ params["lin_b"][:, 0].astype(jnp.float32) \
        + params["pw_b"][0, 0].astype(jnp.float32)                      # scalar

    def tile_b(v):                                                      # (C,) -> (BC,)
        return jnp.tile(v, B_blk)

    cols = []
    for l in range(num_levels):
        for k in range(K):
            w_lk = params["conv_w"][l, :, k]
            if l == 0:
                w_lk = w_lk * att       # fold softmax(fs_attention) into level-0 taps
            cols.append(tile_b(w_lk))
    for l in range(num_levels):
        cols.append(tile_b(params["conv_b"][l, :, 0]))
    for l in range(num_levels - 1):
        cols.append(tile_b(params["alpha"][l, :, 0]))
    cols.append(jnp.broadcast_to(combined_b, (BC,)))
    packed = jnp.stack(cols, axis=1).astype(compute_dtype)              # (BC, P)
    P = packed.shape[1]

    # small block-diagonal selection matrix for one chunk of the final contraction
    sel = jnp.kron(jnp.eye(chunk_b, dtype=jnp.float32),
                   combined_w[None, :]).astype(compute_dtype)           # (chunk_b, chunk_b*C)

    # ---- activations: pack batch onto the sublane axis, pad N and L ---------
    x_p = x.astype(compute_dtype)
    if N_pad != N or L_pad != L:
        x_p = jnp.pad(x_p, ((0, N_pad - N), (0, 0), (0, L_pad - L)))
    x3 = x_p.reshape(num_blocks, BC, L_pad)

    kern = functools.partial(_addstcn_kernel, num_levels=num_levels,
                             kernel_size=kernel_size, dilation_c=dilation_c,
                             valid_len=L, chunk_b=chunk_b)
    out = pl.pallas_call(
        kern,
        out_shape=jax.ShapeDtypeStruct((num_blocks, B_blk, L_pad), jnp.float32),
        grid=(num_blocks,),
        in_specs=[
            pl.BlockSpec((1, BC, L_pad), lambda n: (n, 0, 0)),      # activations
            pl.BlockSpec((BC, P), lambda n: (0, 0)),                # packed params
            pl.BlockSpec((chunk_b, chunk_b * C), lambda n: (0, 0)), # selection chunk
        ],
        out_specs=pl.BlockSpec((1, B_blk, L_pad), lambda n: (n, 0, 0)),
        compiler_params=pltpu.CompilerParams(
            dimension_semantics=("parallel",),
            vmem_limit_bytes=48 * 1024 * 1024),
    )(x3, packed, sel)

    y = out.reshape(N_pad, L_pad)[:N, :L]       # (N, L)
    # PyTorch returns y1.transpose(1, 2): (N, L, 1)
    return y[:, :, None]


def ref_forward(x, params, *, num_levels, kernel_size, dilation_c):
    """Pure-JAX reference mirroring the PyTorch module semantics."""
    N, C, L = x.shape
    K = kernel_size
    att = jax.nn.softmax(params["fs_attention"], axis=0)     # (C, 1)
    h = x * att[None, :, :]
    for l in range(num_levels):
        d = dilation_c ** l
        pad = (K - 1) * d
        w = params["conv_w"][l]                              # (C, K)
        b = params["conv_b"][l]                              # (C, 1)
        xp = jnp.pad(h, ((0, 0), (0, 0), (pad, 0)))
        out = b[None]
        for k in range(K):
            out = out + w[None, :, k:k + 1] * xp[:, :, k * d:k * d + L]
        if l == 0:
            alpha = params["alpha"][l][None]
            h = jnp.where(out > 0, out, alpha * out)
        elif l < num_levels - 1:
            alpha = params["alpha"][l][None]
            z = out + h
            h = jnp.where(z > 0, z, alpha * z)
        else:
            z = out + h
            h = jnp.einsum("cd,ndl->ncl", params["lin_w"], z) + params["lin_b"][None]
    y = jnp.einsum("c,ncl->nl", params["pw_w"][:, 0], h)[:, None, :] + params["pw_b"][0, 0]
    return jnp.transpose(y, (0, 2, 1))


if __name__ == "__main__":
    # ADDSTCN(target, input_size=C, num_levels=3, kernel_size=2, cuda=False, dilation_c=2)
    num_levels, kernel_size, dilation_c = 3, 2, 2

    def make_params(key, C):
        ks = jax.random.split(key, 8)
        return {
            # th.ones(input_size, 1), as in the module __init__
            "fs_attention": jnp.ones((C, 1), jnp.float32),
            # depthwise Conv1d weights (groups=C -> weight (C,1,K), stored squeezed) / biases
            "conv_w": 0.1 * jax.random.normal(ks[1], (num_levels, C, kernel_size), jnp.float32),
            "conv_b": 0.1 * jax.random.normal(ks[2], (num_levels, C, 1), jnp.float32),
            # PReLU default init 0.25 for the first and middle blocks
            "alpha": jnp.full((num_levels - 1, C, 1), 0.25, jnp.float32),
            # LastBlock Linear(C, C)
            "lin_w": 0.01 * jax.random.normal(ks[3], (C, C), jnp.float32),
            "lin_b": 0.1 * jax.random.normal(ks[4], (C, 1), jnp.float32),
            # pointwise Conv1d(C, 1, 1)
            "pw_w": 0.1 * jax.random.normal(ks[5], (C, 1), jnp.float32),
            "pw_b": 0.1 * jax.random.normal(ks[6], (1, 1), jnp.float32),
        }

    key = jax.random.PRNGKey(0)
    k_small, k_big = jax.random.split(key)

    # ---- small case: N=2, C=4, L=128 (f32, tight check) ---------------------
    N, C, L = 2, 4, 128
    params = make_params(k_small, C)
    x = jax.random.normal(jax.random.fold_in(k_small, 1), (N, C, L), jnp.float32)

    y = addstcn_forward(x, params, num_levels=num_levels,
                        kernel_size=kernel_size, dilation_c=dilation_c)
    y = jax.block_until_ready(y)
    y_ref = ref_forward(x, params, num_levels=num_levels,
                        kernel_size=kernel_size, dilation_c=dilation_c)
    assert y.shape == (N, L, 1), y.shape
    assert jnp.allclose(y, y_ref, rtol=1e-4, atol=1e-5), \
        float(jnp.max(jnp.abs(y - y_ref)))

    # ---- larger case: exercises L padding, 2 grid blocks, chunked final matmul
    N2, C2, L2 = 264, 4, 96
    params2 = make_params(k_big, C2)
    x2 = jax.random.normal(jax.random.fold_in(k_big, 1), (N2, C2, L2), jnp.float32)

    y2 = addstcn_forward(x2, params2, num_levels=num_levels,
                         kernel_size=kernel_size, dilation_c=dilation_c)
    y2 = jax.block_until_ready(y2)
    y2_ref = ref_forward(x2, params2, num_levels=num_levels,
                         kernel_size=kernel_size, dilation_c=dilation_c)
    assert y2.shape == (N2, L2, 1), y2.shape
    assert jnp.allclose(y2, y2_ref, rtol=1e-4, atol=1e-5), \
        float(jnp.max(jnp.abs(y2 - y2_ref)))

    # ---- bf16 activation path (v6e/v7x VALU/HBM saver), loose tolerance -----
    y2b = addstcn_forward(x2, params2, num_levels=num_levels,
                          kernel_size=kernel_size, dilation_c=dilation_c,
                          compute_dtype=jnp.bfloat16)
    y2b = jax.block_until_ready(y2b)
    assert jnp.allclose(y2b, y2_ref, rtol=0.1, atol=0.05), \
        float(jnp.max(jnp.abs(y2b - y2_ref)))

    print("KERNEL_OK")
</pallas_src>

<mosaic_0001>
module attributes {stable_mosaic.version = 11 : i64} {
  func.func @_addstcn_kernel(%arg0: i32, %arg1: memref<1x8x128xf32, #tpu.memory_space<vmem>>, %arg2: memref<8x12xf32, #tpu.memory_space<vmem>>, %arg3: memref<2x8xf32, #tpu.memory_space<vmem>>, %arg4: memref<1x2x128xf32, #tpu.memory_space<vmem>>) attributes {dimension_semantics = [#tpu.dimension_semantics<parallel>], iteration_bounds = array<i64: 1>, scalar_prefetch = 0 : i64, scratch_operands = 0 : i64, tpu.core_type = #tpu.core_type<tc>, window_params = [{transform_indices = @transform_0, window_bounds = array<i64: 1, 8, 128>}, {pipeline_mode = #tpu.pipeline_mode<synchronous>, transform_indices = @transform_1, window_bounds = array<i64: 8, 12>}, {pipeline_mode = #tpu.pipeline_mode<synchronous>, transform_indices = @transform_2, window_bounds = array<i64: 2, 8>}, {transform_indices = @transform_3, window_bounds = array<i64: 1, 2, 128>}]} {
    %c0 = arith.constant 0 : index
    %c0_0 = arith.constant 0 : index
    %c0_1 = arith.constant 0 : index
    %0 = vector.load %arg1[%c0, %c0_0, %c0_1] : memref<1x8x128xf32, #tpu.memory_space<vmem>>, vector<1x8x128xf32>
    %1 = vector.shape_cast %0 : vector<1x8x128xf32> to vector<8x128xf32>
    %c0_2 = arith.constant 0 : index
    %c0_3 = arith.constant 0 : index
    %2 = vector.load %arg2[%c0_2, %c0_3] : memref<8x12xf32, #tpu.memory_space<vmem>>, vector<8x12xf32>
    %3 = tpu.iota {dimensions = array<i32: 1>} : vector<1x128xi32>
    %4 = vector.extract_strided_slice %2 {offsets = [0, 1], sizes = [8, 1], strides = [1, 1]} : vector<8x12xf32> to vector<8x1xf32>
    %5 = vector.broadcast %4 : vector<8x1xf32> to vector<8x128xf32>
    %6 = arith.mulf %5, %1 : vector<8x128xf32>
    %7 = vector.extract_strided_slice %2 {offsets = [0, 6], sizes = [8, 1], strides = [1, 1]} : vector<8x12xf32> to vector<8x1xf32>
    %8 = vector.broadcast %7 : vector<8x1xf32> to vector<8x128xf32>
    %9 = arith.addf %6, %8 : vector<8x128xf32>
    %10 = vector.extract_strided_slice %2 {offsets = [0, 0], sizes = [8, 1], strides = [1, 1]} : vector<8x12xf32> to vector<8x1xf32>
    %c1_i32 = arith.constant 1 : i32
    %11 = vector.broadcast %c1_i32 : i32 to vector<1x128xi32>
    %12 = arith.cmpi sge, %3, %11 : vector<1x128xi32>
    %13 = arith.extui %12 : vector<1x128xi1> to vector<1x128xi32>
    %14 = arith.sitofp %13 : vector<1x128xi32> to vector<1x128xf32>
    %c1_i32_4 = arith.constant 1 : i32
    %15 = tpu.dynamic_rotate %1 by %c1_i32_4 dim 1 : vector<8x128xf32>, i32 -> vector<8x128xf32>
    %16 = vector.broadcast %14 : vector<1x128xf32> to vector<8x128xf32>
    %17 = arith.mulf %15, %16 : vector<8x128xf32>
    %18 = vector.broadcast %10 : vector<8x1xf32> to vector<8x128xf32>
    %19 = arith.mulf %18, %17 : vector<8x128xf32>
    %20 = arith.addf %9, %19 : vector<8x128xf32>
    %21 = vector.extract_strided_slice %2 {offsets = [0, 9], sizes = [8, 1], strides = [1, 1]} : vector<8x12xf32> to vector<8x1xf32>
    %cst = arith.constant 0.000000e+00 : f32
    %22 = vector.broadcast %cst : f32 to vector<8x128xf32>
    %23 = arith.cmpf ogt, %20, %22 : vector<8x128xf32>
    %24 = vector.broadcast %21 : vector<8x1xf32> to vector<8x128xf32>
    %25 = arith.mulf %24, %20 : vector<8x128xf32>
    %26 = arith.select %23, %20, %25 : vector<8x128xi1>, vector<8x128xf32>
    %27 = vector.extract_strided_slice %2 {offsets = [0, 3], sizes = [8, 1], strides = [1, 1]} : vector<8x12xf32> to vector<8x1xf32>
    %28 = vector.broadcast %27 : vector<8x1xf32> to vector<8x128xf32>
    %29 = arith.mulf %28, %26 : vector<8x128xf32>
    %30 = vector.extract_strided_slice %2 {offsets = [0, 7], sizes = [8, 1], strides = [1, 1]} : vector<8x12xf32> to vector<8x1xf32>
    %31 = vector.broadcast %30 : vector<8x1xf32> to vector<8x128xf32>
    %32 = arith.addf %29, %31 : vector<8x128xf32>
    %33 = vector.extract_strided_slice %2 {offsets = [0, 2], sizes = [8, 1], strides = [1, 1]} : vector<8x12xf32> to vector<8x1xf32>
    %c2_i32 = arith.constant 2 : i32
    %34 = vector.broadcast %c2_i32 : i32 to vector<1x128xi32>
    %35 = arith.cmpi sge, %3, %34 : vector<1x128xi32>
    %36 = arith.extui %35 : vector<1x128xi1> to vector<1x128xi32>
    %37 = arith.sitofp %36 : vector<1x128xi32> to vector<1x128xf32>
    %c2_i32_5 = arith.constant 2 : i32
    %38 = tpu.dynamic_rotate %26 by %c2_i32_5 dim 1 : vector<8x128xf32>, i32 -> vector<8x128xf32>
    %39 = vector.broadcast %37 : vector<1x128xf32> to vector<8x128xf32>
    %40 = arith.mulf %38, %39 : vector<8x128xf32>
    %41 = vector.broadcast %33 : vector<8x1xf32> to vector<8x128xf32>
    %42 = arith.mulf %41, %40 : vector<8x128xf32>
    %43 = arith.addf %32, %42 : vector<8x128xf32>
    %44 = vector.extract_strided_slice %2 {offsets = [0, 10], sizes = [8, 1], strides = [1, 1]} : vector<8x12xf32> to vector<8x1xf32>
    %45 = arith.addf %43, %26 : vector<8x128xf32>
    %cst_6 = arith.constant 0.000000e+00 : f32
    %46 = vector.broadcast %cst_6 : f32 to vector<8x128xf32>
    %47 = arith.cmpf ogt, %45, %46 : vector<8x128xf32>
    %48 = vector.broadcast %44 : vector<8x1xf32> to vector<8x128xf32>
    %49 = arith.mulf %48, %45 : vector<8x128xf32>
    %50 = arith.select %47, %45, %49 : vector<8x128xi1>, vector<8x128xf32>
    %51 = vector.extract_strided_slice %2 {offsets = [0, 5], sizes = [8, 1], strides = [1, 1]} : vector<8x12xf32> to vector<8x1xf32>
    %52 = vector.broadcast %51 : vector<8x1xf32> to vector<8x128xf32>
    %53 = arith.mulf %52, %50 : vector<8x128xf32>
    %54 = vector.extract_strided_slice %2 {offsets = [0, 8], sizes = [8, 1], strides = [1, 1]} : vector<8x12xf32> to vector<8x1xf32>
    %55 = vector.broadcast %54 : vector<8x1xf32> to vector<8x128xf32>
    %56 = arith.addf %53, %55 : vector<8x128xf32>
    %57 = vector.extract_strided_slice %2 {offsets = [0, 4], sizes = [8, 1], strides = [1, 1]} : vector<8x12xf32> to vector<8x1xf32>
    %c4_i32 = arith.constant 4 : i32
    %58 = vector.broadcast %c4_i32 : i32 to vector<1x128xi32>
    %59 = arith.cmpi sge, %3, %58 : vector<1x128xi32>
    %60 = arith.extui %59 : vector<1x128xi1> to vector<1x128xi32>
    %61 = arith.sitofp %60 : vector<1x128xi32> to vector<1x128xf32>
    %c4_i32_7 = arith.constant 4 : i32
    %62 = tpu.dynamic_rotate %50 by %c4_i32_7 dim 1 : vector<8x128xf32>, i32 -> vector<8x128xf32>
    %63 = vector.broadcast %61 : vector<1x128xf32> to vector<8x128xf32>
    %64 = arith.mulf %62, %63 : vector<8x128xf32>
    %65 = vector.broadcast %57 : vector<8x1xf32> to vector<8x128xf32>
    %66 = arith.mulf %65, %64 : vector<8x128xf32>
    %67 = arith.addf %56, %66 : vector<8x128xf32>
    %68 = arith.addf %67, %50 : vector<8x128xf32>
    %69 = vector.extract_strided_slice %2 {offsets = [0, 11], sizes = [1, 1], strides = [1, 1]} : vector<8x12xf32> to vector<1x1xf32>
    %c0_8 = arith.constant 0 : index
    %c0_9 = arith.constant 0 : index
    %70 = vector.load %arg3[%c0_8, %c0_9] : memref<2x8xf32, #tpu.memory_space<vmem>>, vector<2x8xf32>
    %cst_10 = arith.constant dense<0.000000e+00> : vector<2x128xf32>
    %71 = tpu.matmul %70, %68, %cst_10 {dimension_numbers = #tpu.dot_dimension_numbers<[1], [0], [0], [1], [0, 0, 1, 1], [], []>} : vector<2x8xf32>, vector<8x128xf32>, vector<2x128xf32> -> vector<2x128xf32>
    %72 = vector.broadcast %69 : vector<1x1xf32> to vector<2x128xf32>
    %73 = arith.addf %71, %72 : vector<2x128xf32>
    %c0_11 = arith.constant 0 : index
    %c0_12 = arith.constant 0 : index
    %c0_13 = arith.constant 0 : index
    %74 = vector.load %arg4[%c0_11, %c0_12, %c0_13] : memref<1x2x128xf32, #tpu.memory_space<vmem>>, vector<1x2x128xf32>
    %75 = vector.shape_cast %74 : vector<1x2x128xf32> to vector<2x128xf32>
    %76 = vector.shape_cast %73 : vector<2x128xf32> to vector<1x2x128xf32>
    tpu.vector_store %arg4[%c0_11, %c0_12, %c0_13], %76 {strides = array<i32>} : memref<1x2x128xf32, #tpu.memory_space<vmem>>, vector<1x2x128xf32>,
    return
  }
  func.func @transform_0(%arg0: i32) -> (i32, i32, i32) {
    %c0_i32 = arith.constant 0 : i32
    %c0_i32_0 = arith.constant 0 : i32
    %c0_i32_1 = arith.constant 0 : i32
    return %arg0, %c0_i32, %c0_i32_0 : i32, i32, i32
  }
  func.func @transform_1(%arg0: i32) -> (i32, i32) {
    %c0_i32 = arith.constant 0 : i32
    %c0_i32_0 = arith.constant 0 : i32
    %c0_i32_1 = arith.constant 0 : i32
    return %c0_i32, %c0_i32_0 : i32, i32
  }
  func.func @transform_2(%arg0: i32) -> (i32, i32) {
    %c0_i32 = arith.constant 0 : i32
    %c0_i32_0 = arith.constant 0 : i32
    %c0_i32_1 = arith.constant 0 : i32
    return %c0_i32, %c0_i32_0 : i32, i32
  }
  func.func @transform_3(%arg0: i32) -> (i32, i32, i32) {
    %c0_i32 = arith.constant 0 : i32
    %c0_i32_0 = arith.constant 0 : i32
    %c0_i32_1 = arith.constant 0 : i32
    return %arg0, %c0_i32, %c0_i32_0 : i32, i32, i32
  }
}

</mosaic_0001>

<llo_original>
// kernel: tpu_custom_call.1
$region0: #{tpu_custom_call.1}
  #allocation0 [shape = 'u32[]', space=smem, size = 0x4, offset = 0x4, fixed_abs, tag = 'smem constant byte address 0x4 - core index']
  #allocation1 [shape = 'u32[144,128]{1,0:T(1,128)}', space=vmem, size = 0x12000, scoped, tag = 'internal scratch']
  %s0 = inlined_call_operand.hbm [shape: f32[1,8,128], index: 0, kind: input, shape index: {}]
  %s1 = inlined_call_operand.hbm [shape: f32[8,12], index: 1, kind: input, shape index: {}]
  %s2 = inlined_call_operand.vmem [shape: f32[2,8], index: 2, kind: input, shape index: {}]
  %s3 = inlined_call_operand.hbm [shape: f32[1,2,128], index: 3, kind: output, shape index: {}]
  %s4 = sld [smem:[#allocation0]]
  $region30: #{tpu_custom_call.1} parent=0
    _
  %s6 = ssub.s32 1, %s4
  %s7 = scalar_select 0, %s6, %s4
  $region1: #{tpu_custom_call.1} parent=0
    #allocation2 [shape = 'u8[4096]{0}', space=vmem, size = 0x1000, scoped, tag = 'input window, operand 0, single buffered']
    #allocation3 [shape = 's32[1]{0}', space=sflag, size = 0x4, scoped, tag = 'scoped memory for tpu_custom_call.1']
    #allocation4 [shape = 's32[1]{0}', space=sflag, size = 0x4, scoped, tag = 'scoped memory for tpu_custom_call.1']
    #allocation5 [shape = 'u8[4096]{0}', space=vmem, size = 0x1000, scoped, tag = 'input window, operand 1, single buffered']
    #allocation6 [shape = 's32[1]{0}', space=sflag, size = 0x4, scoped, tag = 'scoped memory for tpu_custom_call.1']
    #allocation7 [shape = 'u8[1024]{0}', space=vmem, size = 0x400, scoped, tag = 'output window, operand 0, single buffered']
    %8 = vsyncpa [#allocation3], 0
    %9 = vsyncpa [#allocation6], 0
    %10 = vsyncpa [#allocation4], 0
    // Predicated region
    $region2: #{tpu_custom_call.1} parent=1 // pred_check
      _
    $region3: #{tpu_custom_call.1} parent=1 // pred_check_branch
      %12 = sbr.rel (0) target = $region5
    $region4: #{tpu_custom_call.1} parent=1 // pred_region
      %s14 = ssub.s32 128, 128
      %15 = vsyncadd [#allocation3], %s14
      %s17 = sshll.u32 [#allocation2], 4
      %s18 = int_to_ptr.vmem [resolvable:$true] %s17
      %20 = dma.hbm_to_vmem [thread:$0]  %s0, 128, %s18, [#allocation3]
    $region5: #{tpu_custom_call.1} parent=1 // pred_fallthru
      _
    // Predicated region
    $region6: #{tpu_custom_call.1} parent=1 // pred_check
      _
    $region7: #{tpu_custom_call.1} parent=1 // pred_check_branch
      %22 = sbr.rel (0) target = $region9
    $region8: #{tpu_custom_call.1} parent=1 // pred_region
      %s24 = ssub.s32 128, 128
      %25 = vsyncadd [#allocation6], %s24
      %s27 = sshll.u32 [#allocation5], 4
      %s28 = int_to_ptr.vmem [resolvable:$true] %s27
      %30 = dma.hbm_to_vmem [thread:$0]  %s1, 128, %s28, [#allocation6]
    $region9: #{tpu_custom_call.1} parent=1 // pred_fallthru
      _
    // Predicated region
    $region10: #{tpu_custom_call.1} parent=1 // pred_check
      _
    $region11: #{tpu_custom_call.1} parent=1 // pred_check_branch
      %32 = sbr.rel (0) target = $region13
    $region12: #{tpu_custom_call.1} parent=1 // pred_region
      _
    $region13: #{tpu_custom_call.1} parent=1 // pred_fallthru
      _
    // Predicated region
    $region14: #{tpu_custom_call.1} parent=1 // pred_check
      _
    $region15: #{tpu_custom_call.1} parent=1 // pred_check_branch
      %34 = sbr.rel (0) target = $region17
    $region16: #{tpu_custom_call.1} parent=1 // pred_region
      %35 = dma.done [#allocation3], 128
    $region17: #{tpu_custom_call.1} parent=1 // pred_fallthru
      _
    // Predicated region
    $region18: #{tpu_custom_call.1} parent=1 // pred_check
      _
    $region19: #{tpu_custom_call.1} parent=1 // pred_check_branch
      %37 = sbr.rel (0) target = $region21
    $region20: #{tpu_custom_call.1} parent=1 // pred_region
      %38 = dma.done [#allocation6], 128
    $region21: #{tpu_custom_call.1} parent=1 // pred_fallthru
      _
    %v39 = vld [vmem:[#allocation2] sm:$0xff]
    %v40 = vld [vmem:[#allocation5] sm:$0xff]
    %v41 = vlaneseq
    %v42 = vand.u32 %v41, 127
    %44 = vset.pattern.permute.xlu0 1
    %45 = vperm.xlu0 %44, %v40
    %v46 = vpop.permute.xlu0 %45
    %v48 = vmul.f32 %v46, %v39
    %49 = vset.pattern.permute.xlu0 6
    %50 = vperm.xlu0 %49, %v40
    %v51 = vpop.permute.xlu0 %50
    %v53 = vadd.f32 %v48, %v51
    %vm54 = vcmp.ge.s32.totalorder %v42, 1
    %v55 = vsel %vm54, 1, 0
    %v56 = vcvt.s32.f32 %v55
    %57 = vrot.lane.b32.xlu0 %v39, 1
    %v58 = vpop.permute.xlu0 %57
    %v59 = vmul.f32 %v58, %v56
    %60 = vset.pattern.permute.xlu0 0
    %61 = vperm.xlu0 %60, %v40
    %v62 = vpop.permute.xlu0 %61
    %v64 = vmul.f32 %v62, %v59
    %v65 = vadd.f32 %v53, %v64
    %vm66 = vcmp.gt.f32.partialorder %v65, 0.0
    %67 = vset.pattern.permute.xlu0 9
    %68 = vperm.xlu0 %67, %v40
    %v69 = vpop.permute.xlu0 %68
    %v71 = vmul.f32 %v69, %v65
    %v72 = vsel %vm66, %v65, %v71
    %73 = vset.pattern.permute.xlu0 3
    %74 = vperm.xlu0 %73, %v40
    %v75 = vpop.permute.xlu0 %74
    %v77 = vmul.f32 %v75, %v72
    %78 = vset.pattern.permute.xlu0 7
    %79 = vperm.xlu0 %78, %v40
    %v80 = vpop.permute.xlu0 %79
    %v82 = vadd.f32 %v77, %v80
    %vm83 = vcmp.ge.s32.totalorder %v42, 2
    %v84 = vsel %vm83, 1, 0
    %v85 = vcvt.s32.f32 %v84
    %86 = vrot.lane.b32.xlu0 %v72, 2
    %v87 = vpop.permute.xlu0 %86
    %v88 = vmul.f32 %v87, %v85
    %89 = vset.pattern.permute.xlu0 2
    %90 = vperm.xlu0 %89, %v40
    %v91 = vpop.permute.xlu0 %90
    %v93 = vmul.f32 %v91, %v88
    %v94 = vadd.f32 %v82, %v93
    %v95 = vadd.f32 %v94, %v72
    %vm96 = vcmp.gt.f32.partialorder %v95, 0.0
    %97 = vset.pattern.permute.xlu0 10
    %98 = vperm.xlu0 %97, %v40
    %v99 = vpop.permute.xlu0 %98
    %v101 = vmul.f32 %v99, %v95
    %v102 = vsel %vm96, %v95, %v101
    %103 = vset.pattern.permute.xlu0 5
    %104 = vperm.xlu0 %103, %v40
    %v105 = vpop.permute.xlu0 %104
    %v107 = vmul.f32 %v105, %v102
    %108 = vset.pattern.permute.xlu0 8
    %109 = vperm.xlu0 %108, %v40
    %v110 = vpop.permute.xlu0 %109
    %v112 = vadd.f32 %v107, %v110
    %vm113 = vcmp.ge.s32.totalorder %v42, 4
    %v114 = vsel %vm113, 1, 0
    %v115 = vcvt.s32.f32 %v114
    %116 = vrot.lane.b32.xlu0 %v102, 4
    %v117 = vpop.permute.xlu0 %116
    %v118 = vmul.f32 %v117, %v115
    %119 = vset.pattern.permute.xlu0 4
    %120 = vperm.xlu0 %119, %v40
    %v121 = vpop.permute.xlu0 %120
    %v123 = vmul.f32 %v121, %v118
    %v124 = vadd.f32 %v112, %v123
    %v125 = vadd.f32 %v124, %v102
    %v126 = vld [vmem:[%s2] sm:$0x3]
    %127 = vrot.lane.b32.xlu0 %v40, 117
    %v128 = vpop.permute.xlu0 %127
    %s129 = vtos %v128
    %v130 = vstv %s129
    %vm132 = vcmask 64512
    %v134 = vsel %vm132, %v126, 0
    %136 = vmatprep.subr.mxu0 0.0
    %137 = vmatpush1.msra.mxu0 %v125
    %138 = vmatprep.subr.mxu0 0.0
    %139 = vmatpush1.msra.mxu0 0.0
    %140 = vmatprep.subr.mxu0 0.0
    %141 = vmatpush1.msra.mxu0 0.0
    %142 = vmatprep.subr.mxu0 0.0
    %143 = vmatpush1.msra.mxu0 0.0
    %144 = vmatprep.subr.mxu0 0.0
    %145 = vmatpush1.msra.mxu0 0.0
    %146 = vmatprep.subr.mxu0 0.0
    %147 = vmatpush1.msra.mxu0 0.0
    %148 = vmatprep.subr.mxu0 0.0
    %149 = vmatpush1.msra.mxu0 0.0
    %150 = vmatprep.subr.mxu0 0.0
    %151 = vmatpush1.msra.mxu0 0.0
    %152 = vmatprep.subr.mxu0 0.0
    %153 = vmatpush1.msra.mxu0 0.0
    %154 = vmatprep.subr.mxu0 0.0
    %155 = vmatpush1.msra.mxu0 0.0
    %156 = vmatprep.subr.mxu0 0.0
    %157 = vmatpush1.msra.mxu0 0.0
    %158 = vmatprep.subr.mxu0 0.0
    %159 = vmatpush1.msra.mxu0 0.0
    %160 = vmatprep.subr.mxu0 0.0
    %161 = vmatpush1.msra.mxu0 0.0
    %162 = vmatprep.subr.mxu0 0.0
    %163 = vmatpush1.msra.mxu0 0.0
    %164 = vmatprep.subr.mxu0 0.0
    %165 = vmatpush1.msra.mxu0 0.0
    %166 = vmatprep.subr.mxu0 0.0
    %167 = vmatpush1.msra.mxu0 0.0
    %168 = vmatprep.subr.mxu0 0.0
    %169 = vmatpush1.msra.mxu0 0.0
    %170 = vmatprep.subr.mxu0 0.0
    %171 = vmatpush1.msra.mxu0 0.0
    %172 = vmatprep.subr.mxu0 0.0
    %173 = vmatpush1.msra.mxu0 0.0
    %174 = vmatprep.subr.mxu0 0.0
    %175 = vmatpush1.msra.mxu0 0.0
    %176 = vmatprep.subr.mxu0 0.0
    %177 = vmatpush1.msra.mxu0 0.0
    %178 = vmatprep.subr.mxu0 0.0
    %179 = vmatpush1.msra.mxu0 0.0
    %180 = vmatprep.subr.mxu0 0.0
    %181 = vmatpush1.msra.mxu0 0.0
    %182 = vmatprep.subr.mxu0 0.0
    %183 = vmatpush1.msra.mxu0 0.0
    %184 = vmatprep.subr.mxu0 0.0
    %185 = vmatpush1.msra.mxu0 0.0
    %186 = vmatprep.subr.mxu0 0.0
    %187 = vmatpush1.msra.mxu0 0.0
    %188 = vmatprep.subr.mxu0 0.0
    %189 = vmatpush1.msra.mxu0 0.0
    %190 = vmatprep.subr.mxu0 0.0
    %191 = vmatpush1.msra.mxu0 0.0
    %192 = vmatprep.subr.mxu0 0.0
    %193 = vmatpush1.msra.mxu0 0.0
    %194 = vmatprep.subr.mxu0 0.0
    %195 = vmatpush1.msra.mxu0 0.0
    %196 = vmatprep.subr.mxu0 0.0
    %197 = vmatpush1.msra.mxu0 0.0
    %198 = vmatprep.subr.mxu0 0.0
    %199 = vmatpush1.msra.mxu0 0.0
    %200 = vmatprep.mubr.f32.mxu0 0.0
    %201 = vmatmul.mubr.f32.gmra.mrb[0].mxu0 %v134
    %v202 = vpop.f32.mrb[0].mxu0
    %v203 = vadd.f32 %v130, %v202
    %v204 = vpop.f32.mrb[0].mxu0
    %205 = vdwg.mxu0
    %206 = vst [vmem:[#allocation7] sm:$0x3] %v203
    // Predicated region
    $region22: #{tpu_custom_call.1} parent=1 // pred_check
      _
    $region23: #{tpu_custom_call.1} parent=1 // pred_check_branch
      %208 = sbr.rel (0) target = $region25
    $region24: #{tpu_custom_call.1} parent=1 // pred_region
      %s210 = ssub.s32 32, 32
      %211 = vsyncadd [#allocation4], %s210
      %s213 = sshll.u32 [#allocation7], 4
      %s214 = int_to_ptr.vmem [resolvable:$true] %s213
      %216 = dma.vmem_to_hbm [thread:$0]  %s214, 32, %s3, [#allocation4]
    $region25: #{tpu_custom_call.1} parent=1 // pred_fallthru
      _
    // Predicated region
    $region26: #{tpu_custom_call.1} parent=1 // pred_check
      _
    $region27: #{tpu_custom_call.1} parent=1 // pred_check_branch
      %218 = sbr.rel (0) target = $region29
    $region28: #{tpu_custom_call.1} parent=1 // pred_region
      %219 = dma.done [#allocation4], 32
    $region29: #{tpu_custom_call.1} parent=1 // pred_fallthru
      _
    %220 = vsyncpa [#allocation3], 1
    %221 = vsyncpa [#allocation6], 1
    %222 = vsyncpa [#allocation4], 1

</llo_original>
